<compile_context>
chip_gen: v6e
topology: v6e:2x2x1
jax: 0.10.0
libtpu: 0.0.40
codegen_flags: <defaults>
</compile_context>

<pallas_src>
import functools

import jax
import jax.numpy as jnp
from jax import lax
from jax.experimental import pallas as pl
from jax.experimental.pallas import tpu as pltpu

_LANE = 128
_ROW_TILE = 4096  # rows of x per grid step on the tiled path (multiple of 128)


def _make_in_spec(block_shape, index_map, *, buffers=None):
    """Input BlockSpec with optional N-deep pipelining (graceful fallback if
    `pipeline_mode` is unavailable in the installed JAX)."""
    if buffers is not None:
        try:
            return pl.BlockSpec(block_shape, index_map,
                                pipeline_mode=pl.Buffered(buffers))
        except (TypeError, AttributeError):
            pass
    return pl.BlockSpec(block_shape, index_map)


def _col_slice_small_kernel(x_ref, o_ref, *, col_local, out_rows):
    # x_ref: (R, lane_blk) — all rows of the lane window containing column col.
    # o_ref: (out_rows, 1)
    o_ref[...] = x_ref[pl.ds(0, out_rows), pl.ds(col_local, 1)]


def _col_slice_tiled_kernel(x_ref, o_ref, *, col_local):
    # x_ref: (_ROW_TILE, lane_blk) row-tile of the lane window containing col.
    # o_ref: (_ROW_TILE // 128, 128) lane-dense output tile:
    #        o[t, l] == x_tile[t * 128 + l, col_local]
    rows, lanes = x_ref.shape
    g = rows // _LANE
    # Split the sublane dim only (minor dim untouched): free re-view.
    x3 = x_ref[...].reshape(g, _LANE, lanes)
    lane_ids = lax.broadcasted_iota(jnp.int32, x3.shape, 2)
    picked = jnp.where(lane_ids == col_local, x3, 0.0)
    # Lane (minor-axis) reduction -> lane-dense (g, 128); XLU/VPU work that
    # overlaps with the next tile's input DMA.
    o_ref[...] = jnp.sum(picked, axis=2)


def slice_neg_idx(x: jax.Array) -> jax.Array:
    """Pallas implementation of x[:-1, -2:-1] for a 2D array."""
    R, C = x.shape
    assert C >= 2, "need at least 2 columns for column index -2"
    out_rows = R - 1
    col = C - 2

    if out_rows <= 0:
        # x[:-1] is empty; nothing for the kernel to do.
        return jnp.zeros((0, 1), dtype=x.dtype)

    # Lane window: fetch only the 128-lane block containing `col` whenever
    # C >= 128 (column C-2 is always inside real data even if the block's tail
    # is OOB-padded).  For C < 128 take full rows (full-extent lane block).
    if C >= _LANE:
        lane_blk, col_blk, col_local = _LANE, col // _LANE, col % _LANE
    else:
        lane_blk, col_blk, col_local = C, 0, col

    itemsize = jnp.dtype(x.dtype).itemsize

    if out_rows <= _ROW_TILE:
        # ---- small path: one grid step, full-extent blocks ----
        kernel = functools.partial(
            _col_slice_small_kernel, col_local=col_local, out_rows=out_rows)
        cost = pl.CostEstimate(
            flops=0, transcendentals=0,
            bytes_accessed=R * lane_blk * itemsize + out_rows * itemsize)
        return pl.pallas_call(
            kernel,
            out_shape=jax.ShapeDtypeStruct((out_rows, 1), x.dtype),
            grid_spec=pltpu.PrefetchScalarGridSpec(
                num_scalar_prefetch=0,
                grid=(1,),
                in_specs=[pl.BlockSpec((R, lane_blk), lambda i: (0, col_blk))],
                out_specs=pl.BlockSpec((out_rows, 1), lambda i: (0, 0)),
            ),
            compiler_params=pltpu.CompilerParams(
                dimension_semantics=("arbitrary",)),
            cost_estimate=cost,
        )(x)

    # ---- tiled lane-dense path ----
    num_tiles = pl.cdiv(out_rows, _ROW_TILE)
    g = _ROW_TILE // _LANE
    kernel = functools.partial(_col_slice_tiled_kernel, col_local=col_local)
    cost = pl.CostEstimate(
        flops=0, transcendentals=0,
        bytes_accessed=num_tiles * _ROW_TILE * lane_blk * itemsize
        + out_rows * itemsize)
    out2d = pl.pallas_call(
        kernel,
        # Padded, lane-dense output: row r of the slice lives at flat index r.
        out_shape=jax.ShapeDtypeStruct((num_tiles * g, _LANE), x.dtype),
        grid_spec=pltpu.PrefetchScalarGridSpec(
            num_scalar_prefetch=0,
            grid=(num_tiles,),
            in_specs=[_make_in_spec((_ROW_TILE, lane_blk),
                                    lambda i: (i, col_blk), buffers=3)],
            out_specs=pl.BlockSpec((g, _LANE), lambda i: (i, 0)),
        ),
        compiler_params=pltpu.CompilerParams(
            dimension_semantics=("parallel",)),
        cost_estimate=cost,
    )(x)
    # Contiguous reshape (free), drop the padded tail (covers both
    # out_rows % _ROW_TILE != 0 and the excluded last row R-1), back to column.
    return out2d.reshape(-1)[:out_rows].reshape(out_rows, 1)


if __name__ == "__main__":
    root = jax.random.PRNGKey(0)
    k0, k1, k2 = jax.random.split(root, 3)

    # 1) Small shape consistent with the ([-1, -1], float32) signature.
    #    Exercises the single-block path and the "only fetch the lane block
    #    containing column C-2" window (col_blk = 1).
    R, C = 8, 256
    x = jax.random.normal(k0, (R, C), dtype=jnp.float32)
    out = jax.block_until_ready(slice_neg_idx(x))
    ref = x[:-1, C - 2:C - 1]
    assert out.shape == (R - 1, 1) and out.dtype == x.dtype
    assert jnp.array_equal(out, ref), "small-path mismatch vs reference"

    # 2) Narrow input (C < 128): full-extent lane block.
    R1, C1 = 9, 32
    x1 = jax.random.normal(k1, (R1, C1), dtype=jnp.float32)
    out1 = jax.block_until_ready(slice_neg_idx(x1))
    assert jnp.array_equal(out1, x1[:-1, C1 - 2:C1 - 1]), "narrow-path mismatch"

    # 3) Tiled lane-dense path: out_rows not a multiple of the row tile,
    #    C % 128 != 0 (column C-2 sits in a padded lane block), and the
    #    excluded last row R-1 lands inside the last tile.
    R2, C2 = _ROW_TILE + 334, 200
    x2 = jax.random.normal(k2, (R2, C2), dtype=jnp.float32)
    out2 = jax.block_until_ready(slice_neg_idx(x2))
    ref2 = x2[:-1, C2 - 2:C2 - 1]
    assert out2.shape == (R2 - 1, 1) and out2.dtype == x2.dtype
    assert jnp.array_equal(out2, ref2), "tiled-path mismatch vs reference"

    print("KERNEL_OK")
</pallas_src>

<mosaic_0001>
module attributes {stable_mosaic.version = 11 : i64} {
  func.func @_col_slice_small_kernel(%arg0: i32, %arg1: memref<8x128xf32, #tpu.memory_space<vmem>>, %arg2: memref<7x1xf32, #tpu.memory_space<vmem>>) attributes {dimension_semantics = [#tpu.dimension_semantics<arbitrary>], iteration_bounds = array<i64: 1>, scalar_prefetch = 0 : i64, scratch_operands = 0 : i64, tpu.core_type = #tpu.core_type<tc>, window_params = [{transform_indices = @transform_0, window_bounds = array<i64: 8, 128>}, {pipeline_mode = #tpu.pipeline_mode<synchronous>, transform_indices = @transform_1, window_bounds = array<i64: 7, 1>}]} {
    %c0 = arith.constant 0 : index
    %c126 = arith.constant 126 : index
    %0 = vector.load %arg1[%c0, %c126] : memref<8x128xf32, #tpu.memory_space<vmem>>, vector<7x1xf32>
    %c0_0 = arith.constant 0 : index
    %c0_1 = arith.constant 0 : index
    %1 = vector.load %arg2[%c0_0, %c0_1] : memref<7x1xf32, #tpu.memory_space<vmem>>, vector<7x1xf32>
    tpu.vector_store %arg2[%c0_0, %c0_1], %0 {strides = array<i32>} : memref<7x1xf32, #tpu.memory_space<vmem>>, vector<7x1xf32>,
    return
  }
  func.func @transform_0(%arg0: i32) -> (i32, i32) {
    %c0_i32 = arith.constant 0 : i32
    %c1_i32 = arith.constant 1 : i32
    %c0_i32_0 = arith.constant 0 : i32
    return %c0_i32, %c1_i32 : i32, i32
  }
  func.func @transform_1(%arg0: i32) -> (i32, i32) {
    %c0_i32 = arith.constant 0 : i32
    %c0_i32_0 = arith.constant 0 : i32
    %c0_i32_1 = arith.constant 0 : i32
    return %c0_i32, %c0_i32_0 : i32, i32
  }
}

</mosaic_0001>

<llo_original>
// kernel: tpu_custom_call.1
$region0: #{tpu_custom_call.1}
  #allocation0 [shape = 'u32[]', space=smem, size = 0x4, offset = 0x4, fixed_abs, tag = 'smem constant byte address 0x4 - core index']
  #allocation1 [shape = 'u32[144,128]{1,0:T(1,128)}', space=vmem, size = 0x12000, scoped, tag = 'internal scratch']
  %s0 = inlined_call_operand.hbm [shape: f32[8,256], index: 0, kind: input, shape index: {}]
  %s1 = inlined_call_operand.vmem [shape: f32[7,1], index: 1, kind: output, shape index: {}]
  %s2 = sld [smem:[#allocation0]]
  $region18: #{tpu_custom_call.1} parent=0
    _
  %s4 = ssub.s32 1, %s2
  %s5 = scalar_select 0, %s4, %s2
  $region1: #{tpu_custom_call.1} parent=0
    #allocation2 [shape = 'u8[4096]{0}', space=vmem, size = 0x1000, scoped, tag = 'input window, operand 0, single buffered']
    #allocation3 [shape = 's32[1]{0}', space=sflag, size = 0x4, scoped, tag = 'scoped memory for tpu_custom_call.1']
    %6 = vsyncpa [#allocation3], 0
    // Predicated region
    $region2: #{tpu_custom_call.1} parent=1 // pred_check
      _
    $region3: #{tpu_custom_call.1} parent=1 // pred_check_branch
      %8 = sbr.rel (0) target = $region5
    $region4: #{tpu_custom_call.1} parent=1 // pred_region
      %s10 = ssub.s32 128, 128
      %11 = vsyncadd [#allocation3], %s10
      %s12 = scalar_lea.hbm %s0, 128
      %s14 = sshll.u32 [#allocation2], 4
      %s15 = int_to_ptr.vmem [resolvable:$true] %s14
      %17 = dma.hbm_to_vmem [thread:$0]  %s12, 128, %s15, [#allocation3]
    $region5: #{tpu_custom_call.1} parent=1 // pred_fallthru
      _
    // Predicated region
    $region6: #{tpu_custom_call.1} parent=1 // pred_check
      _
    $region7: #{tpu_custom_call.1} parent=1 // pred_check_branch
      %19 = sbr.rel (0) target = $region9
    $region8: #{tpu_custom_call.1} parent=1 // pred_region
      %20 = dma.done [#allocation3], 128
    $region9: #{tpu_custom_call.1} parent=1 // pred_fallthru
      _
    %v21 = vld [vmem:[#allocation2] sm:$0x7f]
    %23 = vrot.lane.b32.xlu0 %v21, 2
    %v24 = vpop.permute.xlu0 %23
    %vm26 = vcmask 6144
    %27 = vst.msk [vmem:[%s1] sm:$0x7f] %vm26, %v24
    // Predicated region
    $region10: #{tpu_custom_call.1} parent=1 // pred_check
      _
    $region11: #{tpu_custom_call.1} parent=1 // pred_check_branch
      %29 = sbr.rel (0) target = $region13
    $region12: #{tpu_custom_call.1} parent=1 // pred_region
      _
    $region13: #{tpu_custom_call.1} parent=1 // pred_fallthru
      _
    // Predicated region
    $region14: #{tpu_custom_call.1} parent=1 // pred_check
      _
    $region15: #{tpu_custom_call.1} parent=1 // pred_check_branch
      %31 = sbr.rel (0) target = $region17
    $region16: #{tpu_custom_call.1} parent=1 // pred_region
      _
    $region17: #{tpu_custom_call.1} parent=1 // pred_fallthru
      _
    %32 = vsyncpa [#allocation3], 1

</llo_original>
